<compile_context>
chip_gen: v6e
topology: v6e:2x2x1
jax: 0.10.0
libtpu: 0.0.40
codegen_flags: <defaults>
</compile_context>

<pallas_src>
import jax
import jax.numpy as jnp
from jax.experimental import pallas as pl
from jax.experimental.pallas import tpu as pltpu

# logical layer sizes
DIMS = [13, 10, 10, 8, 4]
GPAD = 16                   # padded per-logical-row feature width (>= max(DIMS[:-1]))
PACK = 8                    # logical rows packed per lane-dense row
LANES = GPAD * PACK         # 128 — full vreg lane width
OUT_LANES = DIMS[-1] * PACK  # 32 — packed output width (4 valid outs per logical row)
MAX_TBP = 1024              # max packed rows per grid step (= 8192 logical rows)
SPLIT_ROWS = 512            # packed rows above which we force >= 2 grid steps (v7x)
SMALL_BATCH = 64            # below this, plain XLA beats kernel dispatch overhead


def _mlp_kernel(x_ref,
                w0_ref, b0_ref,
                w1_ref, b1_ref,
                w2_ref, b2_ref,
                w3_ref, b3_ref,
                o_ref):
    """One packed batch tile: four chained matmul+bias+tanh stages."""
    h = x_ref[...]                                                    # (tbp, 128)
    h = jnp.tanh(jnp.dot(h, w0_ref[...], preferred_element_type=jnp.float32)
                 + b0_ref[...])
    h = jnp.tanh(jnp.dot(h, w1_ref[...], preferred_element_type=jnp.float32)
                 + b1_ref[...])
    h = jnp.tanh(jnp.dot(h, w2_ref[...], preferred_element_type=jnp.float32)
                 + b2_ref[...])
    h = jnp.tanh(jnp.dot(h, w3_ref[...], preferred_element_type=jnp.float32)
                 + b3_ref[...])                                       # (tbp, 32)
    o_ref[...] = h.astype(o_ref.dtype)


def init_params(key):
    """PyTorch-style (uniform +-1/sqrt(fan_in)) init; weights stored (in, out)."""
    params = []
    for i in range(4):
        fan_in, fan_out = DIMS[i], DIMS[i + 1]
        key, kw, kb = jax.random.split(key, 3)
        bound = 1.0 / jnp.sqrt(fan_in)
        w = jax.random.uniform(kw, (fan_in, fan_out), jnp.float32, -bound, bound)
        b = jax.random.uniform(kb, (fan_out,), jnp.float32, -bound, bound)
        params.append((w, b))
    return params


def _block_diag(block, reps):
    r, c = block.shape
    out = jnp.zeros((r * reps, c * reps), jnp.float32)
    for g in range(reps):
        out = out.at[g * r:(g + 1) * r, g * c:(g + 1) * c].set(block)
    return out


def prepare_params(params):
    """One-time packing: block-diagonal 128x128 (last: 128x32) weights, tiled biases."""
    packed = []
    for li, (w, b) in enumerate(params):
        fan_in, fan_out = w.shape
        cpad = GPAD if li < 3 else DIMS[-1]          # last layer keeps only the 4 valid lanes
        wp = jnp.zeros((GPAD, cpad), jnp.float32).at[:fan_in, :fan_out].set(w)
        bp = jnp.zeros((cpad,), jnp.float32).at[:fan_out].set(b)
        packed.append(_block_diag(wp, PACK))         # (128,128) / (128,32)
        packed.append(jnp.tile(bp, PACK)[None, :])   # (1,128)   / (1,32)
    return tuple(packed)


def _bucket_pow2(n, lo):
    n = max(int(n), lo)
    return 1 << (n - 1).bit_length()


@jax.jit
def network_forward_pallas(x, packed_params):
    """x: (B, 13) float32, packed_params: output of prepare_params -> (B, 4)."""
    B = x.shape[0]
    n_rows = -(-B // PACK)                        # packed rows needed
    n_rows_pad = _bucket_pow2(n_rows, PACK)       # bucket to a power of two
    if n_rows_pad < SPLIT_ROWS:
        tbp = n_rows_pad                          # one tile, whole (bucketed) batch
    else:
        tbp = min(MAX_TBP, n_rows_pad // 2)       # >= 2 tiles for v7x megacore
    n_tiles = n_rows_pad // tbp
    b_pad = n_rows_pad * PACK

    # Pad features 13->16 and batch rows to b_pad, then a free row-major reshape
    # to the lane-dense packed layout (8 logical rows per 128-lane row).
    x_p = jnp.zeros((b_pad, GPAD), jnp.float32).at[:B, :DIMS[0]].set(x)
    x_packed = x_p.reshape(n_rows_pad, LANES)

    act_spec = pl.BlockSpec((tbp, LANES), lambda i: (i, 0))
    w_spec = pl.BlockSpec((LANES, LANES), lambda i: (0, 0))       # VMEM-resident
    b_spec = pl.BlockSpec((1, LANES), lambda i: (0, 0))           # VMEM-resident
    w3_spec = pl.BlockSpec((LANES, OUT_LANES), lambda i: (0, 0))
    b3_spec = pl.BlockSpec((1, OUT_LANES), lambda i: (0, 0))
    out_spec = pl.BlockSpec((tbp, OUT_LANES), lambda i: (i, 0))

    out = pl.pallas_call(
        _mlp_kernel,
        grid=(n_tiles,),
        out_shape=jax.ShapeDtypeStruct((n_rows_pad, OUT_LANES), jnp.float32),
        in_specs=[act_spec,
                  w_spec, b_spec,
                  w_spec, b_spec,
                  w_spec, b_spec,
                  w3_spec, b3_spec],
        out_specs=out_spec,
        compiler_params=pltpu.CompilerParams(
            dimension_semantics=("parallel",)),
    )(x_packed, *packed_params)

    # (n_rows_pad, 32) row-major == (b_pad, 4); drop padded batch rows.
    return out.reshape(b_pad, DIMS[-1])[:B]


@jax.jit
def network_forward_ref(x, params):
    """Plain-JAX reference for verification (and tiny-batch fast path)."""
    h = x
    for (w, b) in params:
        h = jnp.tanh(h @ w + b)
    return h


def network_forward(x, packed_params, raw_params=None):
    """Dispatcher: tiny batches use fused XLA, everything else the Pallas kernel."""
    if raw_params is not None and x.shape[0] < SMALL_BATCH:
        return network_forward_ref(x, raw_params)
    return network_forward_pallas(x, packed_params)


if __name__ == "__main__":
    key = jax.random.PRNGKey(0)
    key, kp = jax.random.split(key)
    params = init_params(kp)
    packed_params = prepare_params(params)   # one-time, outside the hot path

    # Exercise the Pallas path at several batch sizes:
    #   2    -> single 8-packed-row tile (smoke test)
    #   300  -> multiple packed rows, batch padding exercised
    #   2500 -> bucketed to 512 packed rows -> 2 "parallel" grid steps
    for B in (2, 300, 2500):
        key, kx = jax.random.split(key)
        x = jax.random.normal(kx, (B, DIMS[0]), dtype=jnp.float32)
        y = jax.block_until_ready(network_forward_pallas(x, packed_params))
        y_ref = network_forward_ref(x, params)
        assert y.shape == (B, DIMS[-1])
        assert jnp.allclose(y, y_ref, atol=1e-5, rtol=1e-5)

    # Dispatcher smoke test (tiny batch takes the plain-XLA fast path).
    key, kx = jax.random.split(key)
    x_small = jax.random.normal(kx, (2, DIMS[0]), dtype=jnp.float32)
    _ = jax.block_until_ready(network_forward(x_small, packed_params, params))

    print("KERNEL_OK")
</pallas_src>

<mosaic_0001>
module attributes {stable_mosaic.version = 11 : i64} {
  func.func @_mlp_kernel(%arg0: i32, %arg1: memref<8x128xf32, #tpu.memory_space<vmem>>, %arg2: memref<128x128xf32, #tpu.memory_space<vmem>>, %arg3: memref<1x128xf32, #tpu.memory_space<vmem>>, %arg4: memref<128x128xf32, #tpu.memory_space<vmem>>, %arg5: memref<1x128xf32, #tpu.memory_space<vmem>>, %arg6: memref<128x128xf32, #tpu.memory_space<vmem>>, %arg7: memref<1x128xf32, #tpu.memory_space<vmem>>, %arg8: memref<128x32xf32, #tpu.memory_space<vmem>>, %arg9: memref<1x32xf32, #tpu.memory_space<vmem>>, %arg10: memref<8x32xf32, #tpu.memory_space<vmem>>) attributes {dimension_semantics = [#tpu.dimension_semantics<parallel>], iteration_bounds = array<i64: 1>, scalar_prefetch = 0 : i64, scratch_operands = 0 : i64, tpu.core_type = #tpu.core_type<tc>, window_params = [{transform_indices = @transform_0, window_bounds = array<i64: 8, 128>}, {pipeline_mode = #tpu.pipeline_mode<synchronous>, transform_indices = @transform_1, window_bounds = array<i64: 128, 128>}, {pipeline_mode = #tpu.pipeline_mode<synchronous>, transform_indices = @transform_2, window_bounds = array<i64: 1, 128>}, {pipeline_mode = #tpu.pipeline_mode<synchronous>, transform_indices = @transform_3, window_bounds = array<i64: 128, 128>}, {pipeline_mode = #tpu.pipeline_mode<synchronous>, transform_indices = @transform_4, window_bounds = array<i64: 1, 128>}, {pipeline_mode = #tpu.pipeline_mode<synchronous>, transform_indices = @transform_5, window_bounds = array<i64: 128, 128>}, {pipeline_mode = #tpu.pipeline_mode<synchronous>, transform_indices = @transform_6, window_bounds = array<i64: 1, 128>}, {pipeline_mode = #tpu.pipeline_mode<synchronous>, transform_indices = @transform_7, window_bounds = array<i64: 128, 32>}, {pipeline_mode = #tpu.pipeline_mode<synchronous>, transform_indices = @transform_8, window_bounds = array<i64: 1, 32>}, {transform_indices = @transform_9, window_bounds = array<i64: 8, 32>}]} {
    %c0 = arith.constant 0 : index
    %c0_0 = arith.constant 0 : index
    %0 = vector.load %arg1[%c0, %c0_0] : memref<8x128xf32, #tpu.memory_space<vmem>>, vector<8x128xf32>
    %c0_1 = arith.constant 0 : index
    %c0_2 = arith.constant 0 : index
    %1 = vector.load %arg2[%c0_1, %c0_2] : memref<128x128xf32, #tpu.memory_space<vmem>>, vector<128x128xf32>
    %cst = arith.constant dense<0.000000e+00> : vector<8x128xf32>
    %2 = tpu.matmul %0, %1, %cst {dimension_numbers = #tpu.dot_dimension_numbers<[1], [0], [0], [1], [0, 0, 1, 1], [], []>} : vector<8x128xf32>, vector<128x128xf32>, vector<8x128xf32> -> vector<8x128xf32>
    %c0_3 = arith.constant 0 : index
    %c0_4 = arith.constant 0 : index
    %3 = vector.load %arg3[%c0_3, %c0_4] : memref<1x128xf32, #tpu.memory_space<vmem>>, vector<1x128xf32>
    %4 = vector.broadcast %3 : vector<1x128xf32> to vector<8x128xf32>
    %5 = arith.addf %2, %4 : vector<8x128xf32>
    %6 = math.tanh %5 : vector<8x128xf32>
    %c0_5 = arith.constant 0 : index
    %c0_6 = arith.constant 0 : index
    %7 = vector.load %arg4[%c0_5, %c0_6] : memref<128x128xf32, #tpu.memory_space<vmem>>, vector<128x128xf32>
    %cst_7 = arith.constant dense<0.000000e+00> : vector<8x128xf32>
    %8 = tpu.matmul %6, %7, %cst_7 {dimension_numbers = #tpu.dot_dimension_numbers<[1], [0], [0], [1], [0, 0, 1, 1], [], []>} : vector<8x128xf32>, vector<128x128xf32>, vector<8x128xf32> -> vector<8x128xf32>
    %c0_8 = arith.constant 0 : index
    %c0_9 = arith.constant 0 : index
    %9 = vector.load %arg5[%c0_8, %c0_9] : memref<1x128xf32, #tpu.memory_space<vmem>>, vector<1x128xf32>
    %10 = vector.broadcast %9 : vector<1x128xf32> to vector<8x128xf32>
    %11 = arith.addf %8, %10 : vector<8x128xf32>
    %12 = math.tanh %11 : vector<8x128xf32>
    %c0_10 = arith.constant 0 : index
    %c0_11 = arith.constant 0 : index
    %13 = vector.load %arg6[%c0_10, %c0_11] : memref<128x128xf32, #tpu.memory_space<vmem>>, vector<128x128xf32>
    %cst_12 = arith.constant dense<0.000000e+00> : vector<8x128xf32>
    %14 = tpu.matmul %12, %13, %cst_12 {dimension_numbers = #tpu.dot_dimension_numbers<[1], [0], [0], [1], [0, 0, 1, 1], [], []>} : vector<8x128xf32>, vector<128x128xf32>, vector<8x128xf32> -> vector<8x128xf32>
    %c0_13 = arith.constant 0 : index
    %c0_14 = arith.constant 0 : index
    %15 = vector.load %arg7[%c0_13, %c0_14] : memref<1x128xf32, #tpu.memory_space<vmem>>, vector<1x128xf32>
    %16 = vector.broadcast %15 : vector<1x128xf32> to vector<8x128xf32>
    %17 = arith.addf %14, %16 : vector<8x128xf32>
    %18 = math.tanh %17 : vector<8x128xf32>
    %c0_15 = arith.constant 0 : index
    %c0_16 = arith.constant 0 : index
    %19 = vector.load %arg8[%c0_15, %c0_16] : memref<128x32xf32, #tpu.memory_space<vmem>>, vector<128x32xf32>
    %cst_17 = arith.constant dense<0.000000e+00> : vector<8x32xf32>
    %20 = tpu.matmul %18, %19, %cst_17 {dimension_numbers = #tpu.dot_dimension_numbers<[1], [0], [0], [1], [0, 0, 1, 1], [], []>} : vector<8x128xf32>, vector<128x32xf32>, vector<8x32xf32> -> vector<8x32xf32>
    %c0_18 = arith.constant 0 : index
    %c0_19 = arith.constant 0 : index
    %21 = vector.load %arg9[%c0_18, %c0_19] : memref<1x32xf32, #tpu.memory_space<vmem>>, vector<1x32xf32>
    %22 = vector.broadcast %21 : vector<1x32xf32> to vector<8x32xf32>
    %23 = arith.addf %20, %22 : vector<8x32xf32>
    %24 = math.tanh %23 : vector<8x32xf32>
    %c0_20 = arith.constant 0 : index
    %c0_21 = arith.constant 0 : index
    %25 = vector.load %arg10[%c0_20, %c0_21] : memref<8x32xf32, #tpu.memory_space<vmem>>, vector<8x32xf32>
    tpu.vector_store %arg10[%c0_20, %c0_21], %24 {strides = array<i32>} : memref<8x32xf32, #tpu.memory_space<vmem>>, vector<8x32xf32>,
    return
  }
  func.func @transform_0(%arg0: i32) -> (i32, i32) {
    %c0_i32 = arith.constant 0 : i32
    %c0_i32_0 = arith.constant 0 : i32
    return %arg0, %c0_i32 : i32, i32
  }
  func.func @transform_1(%arg0: i32) -> (i32, i32) {
    %c0_i32 = arith.constant 0 : i32
    %c0_i32_0 = arith.constant 0 : i32
    %c0_i32_1 = arith.constant 0 : i32
    return %c0_i32, %c0_i32_0 : i32, i32
  }
  func.func @transform_2(%arg0: i32) -> (i32, i32) {
    %c0_i32 = arith.constant 0 : i32
    %c0_i32_0 = arith.constant 0 : i32
    %c0_i32_1 = arith.constant 0 : i32
    return %c0_i32, %c0_i32_0 : i32, i32
  }
  func.func @transform_3(%arg0: i32) -> (i32, i32) {
    %c0_i32 = arith.constant 0 : i32
    %c0_i32_0 = arith.constant 0 : i32
    %c0_i32_1 = arith.constant 0 : i32
    return %c0_i32, %c0_i32_0 : i32, i32
  }
  func.func @transform_4(%arg0: i32) -> (i32, i32) {
    %c0_i32 = arith.constant 0 : i32
    %c0_i32_0 = arith.constant 0 : i32
    %c0_i32_1 = arith.constant 0 : i32
    return %c0_i32, %c0_i32_0 : i32, i32
  }
  func.func @transform_5(%arg0: i32) -> (i32, i32) {
    %c0_i32 = arith.constant 0 : i32
    %c0_i32_0 = arith.constant 0 : i32
    %c0_i32_1 = arith.constant 0 : i32
    return %c0_i32, %c0_i32_0 : i32, i32
  }
  func.func @transform_6(%arg0: i32) -> (i32, i32) {
    %c0_i32 = arith.constant 0 : i32
    %c0_i32_0 = arith.constant 0 : i32
    %c0_i32_1 = arith.constant 0 : i32
    return %c0_i32, %c0_i32_0 : i32, i32
  }
  func.func @transform_7(%arg0: i32) -> (i32, i32) {
    %c0_i32 = arith.constant 0 : i32
    %c0_i32_0 = arith.constant 0 : i32
    %c0_i32_1 = arith.constant 0 : i32
    return %c0_i32, %c0_i32_0 : i32, i32
  }
  func.func @transform_8(%arg0: i32) -> (i32, i32) {
    %c0_i32 = arith.constant 0 : i32
    %c0_i32_0 = arith.constant 0 : i32
    %c0_i32_1 = arith.constant 0 : i32
    return %c0_i32, %c0_i32_0 : i32, i32
  }
  func.func @transform_9(%arg0: i32) -> (i32, i32) {
    %c0_i32 = arith.constant 0 : i32
    %c0_i32_0 = arith.constant 0 : i32
    return %arg0, %c0_i32 : i32, i32
  }
}

</mosaic_0001>

<llo_original>
// kernel: network_forward_pallas.1
$region0: #{network_forward_pallas.1}
  #allocation0 [shape = 'u32[]', space=smem, size = 0x4, offset = 0x4, fixed_abs, tag = 'smem constant byte address 0x4 - core index']
  #allocation1 [shape = 'u32[144,128]{1,0:T(1,128)}', space=vmem, size = 0x12000, scoped, tag = 'internal scratch']
  %s0 = inlined_call_operand.vmem [shape: f32[8,128], index: 0, kind: input, shape index: {}]
  %s1 = inlined_call_operand.vmem [shape: f32[128,128], index: 1, kind: input, shape index: {}]
  %s2 = inlined_call_operand.vmem [shape: f32[1,128], index: 2, kind: input, shape index: {}]
  %s3 = inlined_call_operand.vmem [shape: f32[128,128], index: 3, kind: input, shape index: {}]
  %s4 = inlined_call_operand.vmem [shape: f32[1,128], index: 4, kind: input, shape index: {}]
  %s5 = inlined_call_operand.hbm [shape: f32[128,128], index: 5, kind: input, shape index: {}]
  %s6 = inlined_call_operand.vmem [shape: f32[1,128], index: 6, kind: input, shape index: {}]
  %s7 = inlined_call_operand.vmem [shape: f32[128,32], index: 7, kind: input, shape index: {}]
  %s8 = inlined_call_operand.vmem [shape: f32[1,32], index: 8, kind: input, shape index: {}]
  %s9 = inlined_call_operand.vmem [shape: f32[8,32], index: 9, kind: output, shape index: {}]
  %s10 = sld [smem:[#allocation0]]
  $region50: #{network_forward_pallas.1} parent=0
    _
  %s12 = ssub.s32 1, %s10
  %s13 = scalar_select 0, %s12, %s10
  $region1: #{network_forward_pallas.1} parent=0
    #allocation2 [shape = 'u8[65536]{0}', space=vmem, size = 0x10000, scoped, tag = 'input window, operand 5, single buffered']
    #allocation3 [shape = 's32[1]{0}', space=sflag, size = 0x4, scoped, tag = 'scoped memory for network_forward_pallas.1']
    %14 = vsyncpa [#allocation3], 0
    // Predicated region
    $region2: #{network_forward_pallas.1} parent=1 // pred_check
      _
    $region3: #{network_forward_pallas.1} parent=1 // pred_check_branch
      %16 = sbr.rel (0) target = $region5
    $region4: #{network_forward_pallas.1} parent=1 // pred_region
      _
    $region5: #{network_forward_pallas.1} parent=1 // pred_fallthru
      _
    // Predicated region
    $region6: #{network_forward_pallas.1} parent=1 // pred_check
      _
    $region7: #{network_forward_pallas.1} parent=1 // pred_check_branch
      %18 = sbr.rel (0) target = $region9
    $region8: #{network_forward_pallas.1} parent=1 // pred_region
      _
    $region9: #{network_forward_pallas.1} parent=1 // pred_fallthru
      _
    // Predicated region
    $region10: #{network_forward_pallas.1} parent=1 // pred_check
      _
    $region11: #{network_forward_pallas.1} parent=1 // pred_check_branch
      %20 = sbr.rel (0) target = $region13
    $region12: #{network_forward_pallas.1} parent=1 // pred_region
      _
    $region13: #{network_forward_pallas.1} parent=1 // pred_fallthru
      _
    // Predicated region
    $region14: #{network_forward_pallas.1} parent=1 // pred_check
      _
    $region15: #{network_forward_pallas.1} parent=1 // pred_check_branch
      %22 = sbr.rel (0) target = $region17
    $region16: #{network_forward_pallas.1} parent=1 // pred_region
      _
    $region17: #{network_forward_pallas.1} parent=1 // pred_fallthru
      _
    // Predicated region
    $region18: #{network_forward_pallas.1} parent=1 // pred_check
      _
    $region19: #{network_forward_pallas.1} parent=1 // pred_check_branch
      %24 = sbr.rel (0) target = $region21
    $region20: #{network_forward_pallas.1} parent=1 // pred_region
      _
    $region21: #{network_forward_pallas.1} parent=1 // pred_fallthru
      _
    // Predicated region
    $region22: #{network_forward_pallas.1} parent=1 // pred_check
      _
    $region23: #{network_forward_pallas.1} parent=1 // pred_check_branch
      %26 = sbr.rel (0) target = $region25
    $region24: #{network_forward_pallas.1} parent=1 // pred_region
      %s28 = ssub.s32 2048, 2048
      %29 = vsyncadd [#allocation3], %s28
      %s30 = sshll.u32 [#allocation2], 4
      %s31 = int_to_ptr.vmem [resolvable:$true] %s30
      %36 = dma.hbm_to_vmem [thread:$0]  %s5, 2048, %s31, [#allocation3], 128, 128, 8
    $region25: #{network_forward_pallas.1} parent=1 // pred_fallthru
      _
    // Predicated region
    $region26: #{network_forward_pallas.1} parent=1 // pred_check
      _
    $region27: #{network_forward_pallas.1} parent=1 // pred_check_branch
      %38 = sbr.rel (0) target = $region29
    $region28: #{network_forward_pallas.1} parent=1 // pred_region
      _
    $region29: #{network_forward_pallas.1} parent=1 // pred_fallthru
      _
    // Predicated region
    $region30: #{network_forward_pallas.1} parent=1 // pred_check
      _
    $region31: #{network_forward_pallas.1} parent=1 // pred_check_branch
      %40 = sbr.rel (0) target = $region33
    $region32: #{network_forward_pallas.1} parent=1 // pred_region
      _
    $region33: #{network_forward_pallas.1} parent=1 // pred_fallthru
      _
    // Predicated region
    $region34: #{network_forward_pallas.1} parent=1 // pred_check
      _
    $region35: #{network_forward_pallas.1} parent=1 // pred_check_branch
      %42 = sbr.rel (0) target = $region37
    $region36: #{network_forward_pallas.1} parent=1 // pred_region
      _
    $region37: #{network_forward_pallas.1} parent=1 // pred_fallthru
      _
    // Predicated region
    $region38: #{network_forward_pallas.1} parent=1 // pred_check
      _
    $region39: #{network_forward_pallas.1} parent=1 // pred_check_branch
      %44 = sbr.rel (0) target = $region41
    $region40: #{network_forward_pallas.1} parent=1 // pred_region
      %45 = dma.done [#allocation3], 2048
    $region41: #{network_forward_pallas.1} parent=1 // pred_fallthru
      _
    %v46 = vld [vmem:[%s0] sm:$0xff]
    %v47 = vld [vmem:[%s1] sm:$0xff]
    %v48 = vld [vmem:[%s1 + $0x8] sm:$0xff]
    %v49 = vld [vmem:[%s1 + $0x10] sm:$0xff]
    %v50 = vld [vmem:[%s1 + $0x18] sm:$0xff]
    %v51 = vld [vmem:[%s1 + $0x20] sm:$0xff]
    %v52 = vld [vmem:[%s1 + $0x28] sm:$0xff]
    %v53 = vld [vmem:[%s1 + $0x30] sm:$0xff]
    %v54 = vld [vmem:[%s1 + $0x38] sm:$0xff]
    %v55 = vld [vmem:[%s1 + $0x40] sm:$0xff]
    %v56 = vld [vmem:[%s1 + $0x48] sm:$0xff]
    %v57 = vld [vmem:[%s1 + $0x50] sm:$0xff]
    %v58 = vld [vmem:[%s1 + $0x58] sm:$0xff]
    %v59 = vld [vmem:[%s1 + $0x60] sm:$0xff]
    %v60 = vld [vmem:[%s1 + $0x68] sm:$0xff]
    %v61 = vld [vmem:[%s1 + $0x70] sm:$0xff]
    %v62 = vld [vmem:[%s1 + $0x78] sm:$0xff]
    %v63 = vld [vmem:[%s2] sm:$0x1]
    %v65 = vlaneseq
    %v66 = vshrl.u32 %v65, 7
    %v67 = vsub.s32 0, %v66
    %v68 = vrot.slane %v63, %v67
    %70 = vmatprep.subr.mxu0 0.0
    %71 = vmatpush1.msra.mxu0 %v62
    %72 = vmatprep.subr.mxu0 0.0
    %73 = vmatpush1.msra.mxu0 %v61
    %74 = vmatprep.subr.mxu0 0.0
    %75 = vmatpush1.msra.mxu0 %v60
    %76 = vmatprep.subr.mxu0 0.0
    %77 = vmatpush1.msra.mxu0 %v59
    %78 = vmatprep.subr.mxu0 0.0
    %79 = vmatpush1.msra.mxu0 %v58
    %80 = vmatprep.subr.mxu0 0.0
    %81 = vmatpush1.msra.mxu0 %v57
    %82 = vmatprep.subr.mxu0 0.0
    %83 = vmatpush1.msra.mxu0 %v56
    %84 = vmatprep.subr.mxu0 0.0
    %85 = vmatpush1.msra.mxu0 %v55
    %86 = vmatprep.subr.mxu0 0.0
    %87 = vmatpush1.msra.mxu0 %v54
    %88 = vmatprep.subr.mxu0 0.0
    %89 = vmatpush1.msra.mxu0 %v53
    %90 = vmatprep.subr.mxu0 0.0
    %91 = vmatpush1.msra.mxu0 %v52
    %92 = vmatprep.subr.mxu0 0.0
    %93 = vmatpush1.msra.mxu0 %v51
    %94 = vmatprep.subr.mxu0 0.0
    %95 = vmatpush1.msra.mxu0 %v50
    %96 = vmatprep.subr.mxu0 0.0
    %97 = vmatpush1.msra.mxu0 %v49
    %98 = vmatprep.subr.mxu0 0.0
    %99 = vmatpush1.msra.mxu0 %v48
    %100 = vmatprep.subr.mxu0 0.0
    %101 = vmatpush1.msra.mxu0 %v47
    %102 = vmatprep.subr.mxu0 0.0
    %103 = vmatpush2.msra.mxu0 0.0
    %104 = vmatprep.subr.mxu0 0.0
    %105 = vmatpush2.msra.mxu0 0.0
    %106 = vmatprep.subr.mxu0 0.0
    %107 = vmatpush2.msra.mxu0 0.0
    %108 = vmatprep.subr.mxu0 0.0
    %109 = vmatpush2.msra.mxu0 0.0
    %110 = vmatprep.subr.mxu0 0.0
    %111 = vmatpush2.msra.mxu0 0.0
    %112 = vmatprep.subr.mxu0 0.0
    %113 = vmatpush2.msra.mxu0 0.0
    %114 = vmatprep.subr.mxu0 0.0
    %115 = vmatpush2.msra.mxu0 0.0
    %116 = vmatprep.subr.mxu0 0.0
    %117 = vmatpush2.msra.mxu0 0.0
    %118 = vmatprep.subr.mxu0 0.0
    %119 = vmatpush2.msra.mxu0 0.0
    %120 = vmatprep.subr.mxu0 0.0
    %121 = vmatpush2.msra.mxu0 0.0
    %122 = vmatprep.subr.mxu0 0.0
    %123 = vmatpush2.msra.mxu0 0.0
    %124 = vmatprep.subr.mxu0 0.0
    %125 = vmatpush2.msra.mxu0 0.0
    %126 = vmatprep.subr.mxu0 0.0
    %127 = vmatpush2.msra.mxu0 0.0
    %128 = vmatprep.subr.mxu0 0.0
    %129 = vmatpush2.msra.mxu0 0.0
    %130 = vmatprep.subr.mxu0 0.0
    %131 = vmatpush2.msra.mxu0 0.0
    %132 = vmatprep.subr.mxu0 0.0
    %133 = vmatpush2.msra.mxu0 0.0
    %134 = vmatprep.mubr.f32.mxu0 0.0
    %135 = vmatmul.mubr.f32.gmra.mxu0 %v46
    %v136 = vpop.f32.mrf.mxu0
    %v137 = vadd.f32 %v68, %v136
    %v138 = vpop.f32.mrf.mxu0
    %139 = vdwg.mxu0
    %v140 = vtanh.pop %v137
    %v141 = vld [vmem:[%s3] sm:$0xff]
    %v142 = vld [vmem:[%s3 + $0x8] sm:$0xff]
    %v143 = vld [vmem:[%s3 + $0x10] sm:$0xff]
    %v144 = vld [vmem:[%s3 + $0x18] sm:$0xff]
    %v145 = vld [vmem:[%s3 + $0x20] sm:$0xff]
    %v146 = vld [vmem:[%s3 + $0x28] sm:$0xff]
    %v147 = vld [vmem:[%s3 + $0x30] sm:$0xff]
    %v148 = vld [vmem:[%s3 + $0x38] sm:$0xff]
    %v149 = vld [vmem:[%s3 + $0x40] sm:$0xff]
    %v150 = vld [vmem:[%s3 + $0x48] sm:$0xff]
    %v151 = vld [vmem:[%s3 + $0x50] sm:$0xff]
    %v152 = vld [vmem:[%s3 + $0x58] sm:$0xff]
    %v153 = vld [vmem:[%s3 + $0x60] sm:$0xff]
    %v154 = vld [vmem:[%s3 + $0x68] sm:$0xff]
    %v155 = vld [vmem:[%s3 + $0x70] sm:$0xff]
    %v156 = vld [vmem:[%s3 + $0x78] sm:$0xff]
    %v157 = vld [vmem:[%s4] sm:$0x1]
    %v159 = vlaneseq
    %v160 = vshrl.u32 %v159, 7
    %v161 = vsub.s32 0, %v160
    %v162 = vrot.slane %v157, %v161
    %164 = vmatprep.subr.mxu0 0.0
    %165 = vmatpush1.msra.mxu0 %v156
    %166 = vmatprep.subr.mxu0 0.0
    %167 = vmatpush1.msra.mxu0 %v155
    %168 = vmatprep.subr.mxu0 0.0
    %169 = vmatpush1.msra.mxu0 %v154
    %170 = vmatprep.subr.mxu0 0.0
    %171 = vmatpush1.msra.mxu0 %v153
    %172 = vmatprep.subr.mxu0 0.0
    %173 = vmatpush1.msra.mxu0 %v152
    %174 = vmatprep.subr.mxu0 0.0
    %175 = vmatpush1.msra.mxu0 %v151
    %176 = vmatprep.subr.mxu0 0.0
    %177 = vmatpush1.msra.mxu0 %v150
    %178 = vmatprep.subr.mxu0 0.0
    %179 = vmatpush1.msra.mxu0 %v149
    %180 = vmatprep.subr.mxu0 0.0
    %181 = vmatpush1.msra.mxu0 %v148
    %182 = vmatprep.subr.mxu0 0.0
    %183 = vmatpush1.msra.mxu0 %v147
    %184 = vmatprep.subr.mxu0 0.0
    %185 = vmatpush1.msra.mxu0 %v146
    %186 = vmatprep.subr.mxu0 0.0
    %187 = vmatpush1.msra.mxu0 %v145
    %188 = vmatprep.subr.mxu0 0.0
    %189 = vmatpush1.msra.mxu0 %v144
    %190 = vmatprep.subr.mxu0 0.0
    %191 = vmatpush1.msra.mxu0 %v143
    %192 = vmatprep.subr.mxu0 0.0
    %193 = vmatpush1.msra.mxu0 %v142
    %194 = vmatprep.subr.mxu0 0.0
    %195 = vmatpush1.msra.mxu0 %v141
    %196 = vmatprep.subr.mxu0 0.0
    %197 = vmatpush2.msra.mxu0 0.0
    %198 = vmatprep.subr.mxu0 0.0
    %199 = vmatpush2.msra.mxu0 0.0
    %200 = vmatprep.subr.mxu0 0.0
    %201 = vmatpush2.msra.mxu0 0.0
    %202 = vmatprep.subr.mxu0 0.0
    %203 = vmatpush2.msra.mxu0 0.0
    %204 = vmatprep.subr.mxu0 0.0
    %205 = vmatpush2.msra.mxu0 0.0
    %206 = vmatprep.subr.mxu0 0.0
    %207 = vmatpush2.msra.mxu0 0.0
    %208 = vmatprep.subr.mxu0 0.0
    %209 = vmatpush2.msra.mxu0 0.0
    %210 = vmatprep.subr.mxu0 0.0
    %211 = vmatpush2.msra.mxu0 0.0
    %212 = vmatprep.subr.mxu0 0.0
    %213 = vmatpush2.msra.mxu0 0.0
    %214 = vmatprep.subr.mxu0 0.0
    %215 = vmatpush2.msra.mxu0 0.0
    %216 = vmatprep.subr.mxu0 0.0
    %217 = vmatpush2.msra.mxu0 0.0
    %218 = vmatprep.subr.mxu0 0.0
    %219 = vmatpush2.msra.mxu0 0.0
    %220 = vmatprep.subr.mxu0 0.0
    %221 = vmatpush2.msra.mxu0 0.0
    %222 = vmatprep.subr.mxu0 0.0
    %223 = vmatpush2.msra.mxu0 0.0
    %224 = vmatprep.subr.mxu0 0.0
    %225 = vmatpush2.msra.mxu0 0.0
    %226 = vmatprep.subr.mxu0 0.0
    %227 = vmatpush2.msra.mxu0 0.0
    %228 = vmatprep.mubr.f32.mxu0 0.0
    %229 = vmatmul.mubr.f32.gmra.mxu0 %v140
    %v230 = vpop.f32.mrf.mxu0
    %v231 = vadd.f32 %v162, %v230
    %v232 = vpop.f32.mrf.mxu0
    %233 = vdwg.mxu0
    %v234 = vtanh.pop %v231
    %v235 = vld [vmem:[#allocation2] sm:$0xff]
    %v236 = vld [vmem:[#allocation2 + $0x8] sm:$0xff]
    %v237 = vld [vmem:[#allocation2 + $0x10] sm:$0xff]
    %v238 = vld [vmem:[#allocation2 + $0x18] sm:$0xff]
    %v239 = vld [vmem:[#allocation2 + $0x20] sm:$0xff]
    %v240 = vld [vmem:[#allocation2 + $0x28] sm:$0xff]
    %v241 = vld [vmem:[#allocation2 + $0x30] sm:$0xff]
    %v242 = vld [vmem:[#allocation2 + $0x38] sm:$0xff]
    %v243 = vld [vmem:[#allocation2 + $0x40] sm:$0xff]
    %v244 = vld [vmem:[#allocation2 + $0x48] sm:$0xff]
    %v245 = vld [vmem:[#allocation2 + $0x50] sm:$0xff]
    %v246 = vld [vmem:[#allocation2 + $0x58] sm:$0xff]
    %v247 = vld [vmem:[#allocation2 + $0x60] sm:$0xff]
    %v248 = vld [vmem:[#allocation2 + $0x68] sm:$0xff]
    %v249 = vld [vmem:[#allocation2 + $0x70] sm:$0xff]
    %v250 = vld [vmem:[#allocation2 + $0x78] sm:$0xff]
    %v251 = vld [vmem:[%s6] sm:$0x1]
    %v253 = vlaneseq
    %v254 = vshrl.u32 %v253, 7
    %v255 = vsub.s32 0, %v254
    %v256 = vrot.slane %v251, %v255
    %258 = vmatprep.subr.mxu0 0.0
    %259 = vmatpush1.msra.mxu0 %v250
    %260 = vmatprep.subr.mxu0 0.0
    %261 = vmatpush1.msra.mxu0 %v249
    %262 = vmatprep.subr.mxu0 0.0
    %263 = vmatpush1.msra.mxu0 %v248
    %264 = vmatprep.subr.mxu0 0.0
    %265 = vmatpush1.msra.mxu0 %v247
    %266 = vmatprep.subr.mxu0 0.0
    %267 = vmatpush1.msra.mxu0 %v246
    %268 = vmatprep.subr.mxu0 0.0
    %269 = vmatpush1.msra.mxu0 %v245
    %270 = vmatprep.subr.mxu0 0.0
    %271 = vmatpush1.msra.mxu0 %v244
    %272 = vmatprep.subr.mxu0 0.0
    %273 = vmatpush1.msra.mxu0 %v243
    %274 = vmatprep.subr.mxu0 0.0
    %275 = vmatpush1.msra.mxu0 %v242
    %276 = vmatprep.subr.mxu0 0.0
    %277 = vmatpush1.msra.mxu0 %v241
    %278 = vmatprep.subr.mxu0 0.0
    %279 = vmatpush1.msra.mxu0 %v240
    %280 = vmatprep.subr.mxu0 0.0
    %281 = vmatpush1.msra.mxu0 %v239
    %282 = vmatprep.subr.mxu0 0.0
    %283 = vmatpush1.msra.mxu0 %v238
    %284 = vmatprep.subr.mxu0 0.0
    %285 = vmatpush1.msra.mxu0 %v237
    %286 = vmatprep.subr.mxu0 0.0
    %287 = vmatpush1.msra.mxu0 %v236
    %288 = vmatprep.subr.mxu0 0.0
    %289 = vmatpush1.msra.mxu0 %v235
    %290 = vmatprep.subr.mxu0 0.0
    %291 = vmatpush2.msra.mxu0 0.0
    %292 = vmatprep.subr.mxu0 0.0
    %293 = vmatpush2.msra.mxu0 0.0
    %294 = vmatprep.subr.mxu0 0.0
    %295 = vmatpush2.msra.mxu0 0.0
    %296 = vmatprep.subr.mxu0 0.0
    %297 = vmatpush2.msra.mxu0 0.0
    %298 = vmatprep.subr.mxu0 0.0
    %299 = vmatpush2.msra.mxu0 0.0
    %300 = vmatprep.subr.mxu0 0.0
    %301 = vmatpush2.msra.mxu0 0.0
    %302 = vmatprep.subr.mxu0 0.0
    %303 = vmatpush2.msra.mxu0 0.0
    %304 = vmatprep.subr.mxu0 0.0
    %305 = vmatpush2.msra.mxu0 0.0
    %306 = vmatprep.subr.mxu0 0.0
    %307 = vmatpush2.msra.mxu0 0.0
    %308 = vmatprep.subr.mxu0 0.0
    %309 = vmatpush2.msra.mxu0 0.0
    %310 = vmatprep.subr.mxu0 0.0
    %311 = vmatpush2.msra.mxu0 0.0
    %312 = vmatprep.subr.mxu0 0.0
    %313 = vmatpush2.msra.mxu0 0.0
    %314 = vmatprep.subr.mxu0 0.0
    %315 = vmatpush2.msra.mxu0 0.0
    %316 = vmatprep.subr.mxu0 0.0
    %317 = vmatpush2.msra.mxu0 0.0
    %318 = vmatprep.subr.mxu0 0.0
    %319 = vmatpush2.msra.mxu0 0.0
    %320 = vmatprep.subr.mxu0 0.0
    %321 = vmatpush2.msra.mxu0 0.0
    %322 = vmatprep.mubr.f32.mxu0 0.0
    %323 = vmatmul.mubr.f32.gmra.mxu0 %v234
    %v324 = vpop.f32.mrf.mxu0
    %v325 = vadd.f32 %v256, %v324
    %v326 = vpop.f32.mrf.mxu0
    %327 = vdwg.mxu0
    %v328 = vtanh.pop %v325
    %v329 = vld [vmem:[%s7] sm:$0xff]
    %v330 = vld [vmem:[%s7 + $0x8] sm:$0xff]
    %v331 = vld [vmem:[%s7 + $0x10] sm:$0xff]
    %v332 = vld [vmem:[%s7 + $0x18] sm:$0xff]
    %v333 = vld [vmem:[%s7 + $0x20] sm:$0xff]
    %v334 = vld [vmem:[%s7 + $0x28] sm:$0xff]
    %v335 = vld [vmem:[%s7 + $0x30] sm:$0xff]
    %v336 = vld [vmem:[%s7 + $0x38] sm:$0xff]
    %v337 = vld [vmem:[%s7 + $0x40] sm:$0xff]
    %v338 = vld [vmem:[%s7 + $0x48] sm:$0xff]
    %v339 = vld [vmem:[%s7 + $0x50] sm:$0xff]
    %v340 = vld [vmem:[%s7 + $0x58] sm:$0xff]
    %v341 = vld [vmem:[%s7 + $0x60] sm:$0xff]
    %v342 = vld [vmem:[%s7 + $0x68] sm:$0xff]
    %v343 = vld [vmem:[%s7 + $0x70] sm:$0xff]
    %v344 = vld [vmem:[%s7 + $0x78] sm:$0xff]
    %v345 = vld [vmem:[%s8] sm:$0x1]
    %v347 = vlaneseq
    %v348 = vshrl.u32 %v347, 7
    %v349 = vsub.s32 0, %v348
    %v350 = vrot.slane %v345, %v349
    %352 = vmatprep.subr.mxu0 0.0
    %353 = vmatpush1.msra.mxu0 %v344
    %354 = vmatprep.subr.mxu0 0.0
    %355 = vmatpush1.msra.mxu0 %v343
    %356 = vmatprep.subr.mxu0 0.0
    %357 = vmatpush1.msra.mxu0 %v342
    %358 = vmatprep.subr.mxu0 0.0
    %359 = vmatpush1.msra.mxu0 %v341
    %360 = vmatprep.subr.mxu0 0.0
    %361 = vmatpush1.msra.mxu0 %v340
    %362 = vmatprep.subr.mxu0 0.0
    %363 = vmatpush1.msra.mxu0 %v339
    %364 = vmatprep.subr.mxu0 0.0
    %365 = vmatpush1.msra.mxu0 %v338
    %366 = vmatprep.subr.mxu0 0.0
    %367 = vmatpush1.msra.mxu0 %v337
    %368 = vmatprep.subr.mxu0 0.0
    %369 = vmatpush1.msra.mxu0 %v336
    %370 = vmatprep.subr.mxu0 0.0
    %371 = vmatpush1.msra.mxu0 %v335
    %372 = vmatprep.subr.mxu0 0.0
    %373 = vmatpush1.msra.mxu0 %v334
    %374 = vmatprep.subr.mxu0 0.0
    %375 = vmatpush1.msra.mxu0 %v333
    %376 = vmatprep.subr.mxu0 0.0
    %377 = vmatpush1.msra.mxu0 %v332
    %378 = vmatprep.subr.mxu0 0.0
    %379 = vmatpush1.msra.mxu0 %v331
    %380 = vmatprep.subr.mxu0 0.0
    %381 = vmatpush1.msra.mxu0 %v330
    %382 = vmatprep.subr.mxu0 0.0
    %383 = vmatpush1.msra.mxu0 %v329
    %384 = vmatprep.subr.mxu0 0.0
    %385 = vmatpush2.msra.mxu0 0.0
    %386 = vmatprep.subr.mxu0 0.0
    %387 = vmatpush2.msra.mxu0 0.0
    %388 = vmatprep.subr.mxu0 0.0
    %389 = vmatpush2.msra.mxu0 0.0
    %390 = vmatprep.subr.mxu0 0.0
    %391 = vmatpush2.msra.mxu0 0.0
    %392 = vmatprep.subr.mxu0 0.0
    %393 = vmatpush2.msra.mxu0 0.0
    %394 = vmatprep.subr.mxu0 0.0
    %395 = vmatpush2.msra.mxu0 0.0
    %396 = vmatprep.subr.mxu0 0.0
    %397 = vmatpush2.msra.mxu0 0.0
    %398 = vmatprep.subr.mxu0 0.0
    %399 = vmatpush2.msra.mxu0 0.0
    %400 = vmatprep.subr.mxu0 0.0
    %401 = vmatpush2.msra.mxu0 0.0
    %402 = vmatprep.subr.mxu0 0.0
    %403 = vmatpush2.msra.mxu0 0.0
    %404 = vmatprep.subr.mxu0 0.0
    %405 = vmatpush2.msra.mxu0 0.0
    %406 = vmatprep.subr.mxu0 0.0
    %407 = vmatpush2.msra.mxu0 0.0
    %408 = vmatprep.subr.mxu0 0.0
    %409 = vmatpush2.msra.mxu0 0.0
    %410 = vmatprep.subr.mxu0 0.0
    %411 = vmatpush2.msra.mxu0 0.0
    %412 = vmatprep.subr.mxu0 0.0
    %413 = vmatpush2.msra.mxu0 0.0
    %414 = vmatprep.subr.mxu0 0.0
    %415 = vmatpush2.msra.mxu0 0.0
    %416 = vmatprep.mubr.f32.mxu0 0.0
    %417 = vmatmul.mubr.f32.gmra.mxu0 %v328
    %v418 = vpop.f32.mrf.mxu0
    %v419 = vadd.f32 %v350, %v418
    %v420 = vpop.f32.mrf.mxu0
    %421 = vdwg.mxu0
    %v422 = vtanh.pop %v419
    %vm423 = vcmask 261120
    %424 = vst.msk [vmem:[%s9] sm:$0xff] %vm423, %v422
    // Predicated region
    $region42: #{network_forward_pallas.1} parent=1 // pred_check
      _
    $region43: #{network_forward_pallas.1} parent=1 // pred_check_branch
      %426 = sbr.rel (0) target = $region45
    $region44: #{network_forward_pallas.1} parent=1 // pred_region
      _
    $region45: #{network_forward_pallas.1} parent=1 // pred_fallthru
      _
    // Predicated region
    $region46: #{network_forward_pallas.1} parent=1 // pred_check
      _
    $region47: #{network_forward_pallas.1} parent=1 // pred_check_branch
      %428 = sbr.rel (0) target = $region49
    $region48: #{network_forward_pallas.1} parent=1 // pred_region
      _
    $region49: #{network_forward_pallas.1} parent=1 // pred_fallthru
      _
    %429 = vsyncpa [#allocation3], 1

</llo_original>
